<compile_context>
chip_gen: v7x
topology: tpu7x:2x2x1
jax: 0.10.0
libtpu: 0.0.40
codegen_flags: <defaults>
</compile_context>

<pallas_src>
import functools

import jax
import jax.numpy as jnp
from jax.experimental import pallas as pl
from jax.experimental.pallas import tpu as pltpu

_LANE = 128
_DEFAULT_BLOCK_ROWS = 2048  # 2048 x 128 x 4B = 1 MiB per f32 input block


def _make_kernel(total_rows: int, apply_mask: bool):
    def kernel(yh_ref, y_ref, sy_ref, sd2_ref, syd2_ref):
        # Load native-dtype tiles, upcast on the VPU.
        yh = yh_ref[...].astype(jnp.float32)
        y = y_ref[...].astype(jnp.float32)

        d = yh - y
        d2 = d * d
        yd2 = y * d2

        if apply_mask:
            # Tail grid block extends past the real row count: rows beyond
            # `total_rows` contain unspecified data -> select-them-away with
            # jnp.where (NaN/Inf in the unselected branch is harmless).
            block_rows = y_ref.shape[0]
            base = pl.program_id(0) * block_rows
            row = base + jax.lax.broadcasted_iota(jnp.int32, d2.shape, 0)
            valid = row < total_rows
            y = jnp.where(valid, y, 0.0)
            d2 = jnp.where(valid, d2, 0.0)
            yd2 = jnp.where(valid, yd2, 0.0)

        # Reduce the tile down to (1, 128) lane partials; the final cross-lane
        # fold happens in the wrapper over the tiny partials array.
        sy_ref[...] = jnp.sum(y, axis=0, keepdims=True)
        sd2_ref[...] = jnp.sum(d2, axis=0, keepdims=True)
        syd2_ref[...] = jnp.sum(yd2, axis=0, keepdims=True)

    return kernel


@functools.partial(jax.jit, static_argnames=("alpha", "block_rows"))
def weighted_mse_loss(y_hat, y, alpha: float = 0.3,
                      block_rows: int = _DEFAULT_BLOCK_ROWS):
    """Weighted MSE loss matching the PyTorch module's forward semantics.

    Note: if mean(y) is ~0 the loss divides by ~0 — same behavior as the
    PyTorch reference.
    """
    assert y_hat.shape == y.shape, "y_hat and y must have the same shape"
    n = y.size
    assert n > 0, "empty input"

    # Flatten in native dtype (no f32 copies in HBM).
    yh = y_hat.reshape(-1)
    yf = y.reshape(-1)

    # Pad only to the next lane boundary when needed (<=127 zeros; zeros
    # contribute 0 to every accumulated sum, the mean uses the original n).
    pad = (-n) % _LANE
    if pad:
        yh = jnp.pad(yh, (0, pad))
        yf = jnp.pad(yf, (0, pad))
    rows = (n + pad) // _LANE

    # Lane-dense (rows, 128) view; free (bitcast) when no pad was required.
    yh2 = yh.reshape(rows, _LANE)
    yf2 = yf.reshape(rows, _LANE)

    block_rows = min(block_rows, rows)  # small inputs: one full-extent block
    num_blocks = pl.cdiv(rows, block_rows)
    apply_mask = (rows % block_rows) != 0

    kernel = _make_kernel(rows, apply_mask)
    part_shape = jax.ShapeDtypeStruct((num_blocks, _LANE), jnp.float32)

    s_y_p, s_d2_p, s_yd2_p = pl.pallas_call(
        kernel,
        out_shape=(part_shape, part_shape, part_shape),
        grid=(num_blocks,),
        in_specs=[
            pl.BlockSpec((block_rows, _LANE), lambda i: (i, 0)),
            pl.BlockSpec((block_rows, _LANE), lambda i: (i, 0)),
        ],
        out_specs=(
            pl.BlockSpec((1, _LANE), lambda i: (i, 0)),
            pl.BlockSpec((1, _LANE), lambda i: (i, 0)),
            pl.BlockSpec((1, _LANE), lambda i: (i, 0)),
        ),
        compiler_params=pltpu.CompilerParams(
            # Every grid step owns its own output row -> fully parallel, so
            # megacore (v7x) shards the stream across both TensorCores.
            dimension_semantics=("parallel",),
        ),
    )(yh2, yf2)

    # Cheap scalar glue: fold the tiny partials and apply the identity.
    s_y = jnp.sum(s_y_p)
    s_d2 = jnp.sum(s_d2_p)
    s_yd2 = jnp.sum(s_yd2_p)

    n_f = jnp.float32(n)
    mean_y = s_y / n_f
    # mean(w * d2) = mean(d2) + alpha * mean(y * d2) / mean(y)
    return s_d2 / n_f + jnp.float32(alpha) * (s_yd2 / n_f) / mean_y


def _reference_loss(y_hat, y, alpha: float = 0.3):
    yh = y_hat.astype(jnp.float32)
    yf = y.astype(jnp.float32)
    w = 1.0 + alpha * (yf / jnp.mean(yf))
    return jnp.mean(w * (yh - yf) ** 2)


if __name__ == "__main__":
    key = jax.random.PRNGKey(0)
    k1, k2, k3, k4 = jax.random.split(key, 4)

    # 1) LSTM-style prediction tensors: (batch=2, seq=16, hidden=64), f32.
    shape = (2, 16, 64)
    y = jax.random.uniform(k1, shape, dtype=jnp.float32, minval=0.5, maxval=2.0)
    y_hat = y + 0.1 * jax.random.normal(k2, shape, dtype=jnp.float32)
    loss = jax.block_until_ready(weighted_mse_loss(y_hat, y, alpha=0.3))
    ref = jax.block_until_ready(_reference_loss(y_hat, y, alpha=0.3))
    assert jnp.allclose(loss, ref, rtol=1e-5, atol=1e-6), (loss, ref)

    # 2) Odd size exercising the lane-pad + partial-tail-block mask path, with
    #    a deliberately tiny block so several grid steps (and a masked tail) run.
    shape2 = (3, 7, 100)  # 2100 elements, not a multiple of 128
    y2 = jax.random.uniform(k3, shape2, dtype=jnp.float32, minval=0.1, maxval=3.0)
    y2_hat = y2 + 0.05 * jax.random.normal(k4, shape2, dtype=jnp.float32)
    loss2 = jax.block_until_ready(
        weighted_mse_loss(y2_hat, y2, alpha=0.3, block_rows=8))
    ref2 = jax.block_until_ready(_reference_loss(y2_hat, y2, alpha=0.3))
    assert jnp.allclose(loss2, ref2, rtol=1e-5, atol=1e-6), (loss2, ref2)

    # 3) bf16 inputs: the f32 cast happens inside the kernel (half the HBM bytes).
    yb = y.astype(jnp.bfloat16)
    yb_hat = y_hat.astype(jnp.bfloat16)
    loss3 = jax.block_until_ready(weighted_mse_loss(yb_hat, yb, alpha=0.3))
    ref3 = jax.block_until_ready(_reference_loss(yb_hat, yb, alpha=0.3))
    assert jnp.allclose(loss3, ref3, rtol=1e-4, atol=1e-5), (loss3, ref3)

    print("KERNEL_OK")
</pallas_src>

<mosaic_0001>
module attributes {stable_mosaic.version = 11 : i64} {
  func.func @kernel(%arg0: i32, %arg1: memref<16x128xf32, #tpu.memory_space<vmem>>, %arg2: memref<16x128xf32, #tpu.memory_space<vmem>>, %arg3: memref<1x128xf32, #tpu.memory_space<vmem>>, %arg4: memref<1x128xf32, #tpu.memory_space<vmem>>, %arg5: memref<1x128xf32, #tpu.memory_space<vmem>>) attributes {dimension_semantics = [#tpu.dimension_semantics<parallel>], iteration_bounds = array<i64: 1>, scalar_prefetch = 0 : i64, scratch_operands = 0 : i64, tpu.core_type = #tpu.core_type<tc>, window_params = [{transform_indices = @transform_0, window_bounds = array<i64: 16, 128>}, {transform_indices = @transform_1, window_bounds = array<i64: 16, 128>}, {transform_indices = @transform_2, window_bounds = array<i64: 1, 128>}, {transform_indices = @transform_3, window_bounds = array<i64: 1, 128>}, {transform_indices = @transform_4, window_bounds = array<i64: 1, 128>}]} {
    %c0 = arith.constant 0 : index
    %c0_0 = arith.constant 0 : index
    %0 = vector.load %arg1[%c0, %c0_0] : memref<16x128xf32, #tpu.memory_space<vmem>>, vector<16x128xf32>
    %c0_1 = arith.constant 0 : index
    %c0_2 = arith.constant 0 : index
    %1 = vector.load %arg2[%c0_1, %c0_2] : memref<16x128xf32, #tpu.memory_space<vmem>>, vector<16x128xf32>
    %2 = arith.subf %0, %1 : vector<16x128xf32>
    %3 = arith.mulf %2, %2 : vector<16x128xf32>
    %4 = arith.mulf %1, %3 : vector<16x128xf32>
    %cst = arith.constant dense<0.000000e+00> : vector<128xf32>
    %5 = vector.multi_reduction <add>, %1, %cst [0] : vector<16x128xf32> to vector<128xf32>
    %6 = vector.shape_cast %5 : vector<128xf32> to vector<1x128xf32>
    %c0_3 = arith.constant 0 : index
    %c0_4 = arith.constant 0 : index
    %7 = vector.load %arg3[%c0_3, %c0_4] : memref<1x128xf32, #tpu.memory_space<vmem>>, vector<1x128xf32>
    tpu.vector_store %arg3[%c0_3, %c0_4], %6 {strides = array<i32>} : memref<1x128xf32, #tpu.memory_space<vmem>>, vector<1x128xf32>,
    %cst_5 = arith.constant dense<0.000000e+00> : vector<128xf32>
    %8 = vector.multi_reduction <add>, %3, %cst_5 [0] : vector<16x128xf32> to vector<128xf32>
    %9 = vector.shape_cast %8 : vector<128xf32> to vector<1x128xf32>
    %c0_6 = arith.constant 0 : index
    %c0_7 = arith.constant 0 : index
    %10 = vector.load %arg4[%c0_6, %c0_7] : memref<1x128xf32, #tpu.memory_space<vmem>>, vector<1x128xf32>
    tpu.vector_store %arg4[%c0_6, %c0_7], %9 {strides = array<i32>} : memref<1x128xf32, #tpu.memory_space<vmem>>, vector<1x128xf32>,
    %cst_8 = arith.constant dense<0.000000e+00> : vector<128xf32>
    %11 = vector.multi_reduction <add>, %4, %cst_8 [0] : vector<16x128xf32> to vector<128xf32>
    %12 = vector.shape_cast %11 : vector<128xf32> to vector<1x128xf32>
    %c0_9 = arith.constant 0 : index
    %c0_10 = arith.constant 0 : index
    %13 = vector.load %arg5[%c0_9, %c0_10] : memref<1x128xf32, #tpu.memory_space<vmem>>, vector<1x128xf32>
    tpu.vector_store %arg5[%c0_9, %c0_10], %12 {strides = array<i32>} : memref<1x128xf32, #tpu.memory_space<vmem>>, vector<1x128xf32>,
    return
  }
  func.func @transform_0(%arg0: i32) -> (i32, i32) {
    %c0_i32 = arith.constant 0 : i32
    %c0_i32_0 = arith.constant 0 : i32
    return %arg0, %c0_i32 : i32, i32
  }
  func.func @transform_1(%arg0: i32) -> (i32, i32) {
    %c0_i32 = arith.constant 0 : i32
    %c0_i32_0 = arith.constant 0 : i32
    return %arg0, %c0_i32 : i32, i32
  }
  func.func @transform_2(%arg0: i32) -> (i32, i32) {
    %c0_i32 = arith.constant 0 : i32
    %c0_i32_0 = arith.constant 0 : i32
    return %arg0, %c0_i32 : i32, i32
  }
  func.func @transform_3(%arg0: i32) -> (i32, i32) {
    %c0_i32 = arith.constant 0 : i32
    %c0_i32_0 = arith.constant 0 : i32
    return %arg0, %c0_i32 : i32, i32
  }
  func.func @transform_4(%arg0: i32) -> (i32, i32) {
    %c0_i32 = arith.constant 0 : i32
    %c0_i32_0 = arith.constant 0 : i32
    return %arg0, %c0_i32 : i32, i32
  }
}

</mosaic_0001>

<llo_original>
// kernel: weighted_mse_loss.1
$region0: #{weighted_mse_loss.1}
  #allocation0 [shape = 'u32[]', space=smem, size = 0x4, offset = 0x4, fixed_abs, tag = 'smem constant byte address 0x4 - core index']
  #allocation1 [shape = 'u32[144,128]{1,0:T(1,128)}', space=vmem, size = 0x12000, scoped, tag = 'internal scratch']
  %s0 = inlined_call_operand.vmem [shape: f32[16,128], index: 0, kind: input, shape index: {}]
  %s1 = inlined_call_operand.vmem [shape: f32[16,128], index: 1, kind: input, shape index: {}]
  %s2 = inlined_call_operand.vmem [shape: f32[1,128], index: 2, kind: output, shape index: {0}]
  %s3 = inlined_call_operand.vmem [shape: f32[1,128], index: 3, kind: output, shape index: {1}]
  %s4 = inlined_call_operand.vmem [shape: f32[1,128], index: 4, kind: output, shape index: {2}]
  %5 = xla_tuple %s2, %s3, %s4
  %s6 = sld [smem:[#allocation0]]
  $region34: #{weighted_mse_loss.1} parent=0
    _
  %s8 = ssub.s32 1, %s6
  %s9 = scalar_select 0, %s8, %s6
  // Predicated region
  $region2: #{weighted_mse_loss.1} parent=0 // pred_check
    _
  $region3: #{weighted_mse_loss.1} parent=0 // pred_check_branch
    %11 = sbr.rel (0) target = $region5
  $region4: #{weighted_mse_loss.1} parent=0 // pred_region
    _
  $region5: #{weighted_mse_loss.1} parent=0 // pred_fallthru
    _
  // Predicated region
  $region6: #{weighted_mse_loss.1} parent=0 // pred_check
    _
  $region7: #{weighted_mse_loss.1} parent=0 // pred_check_branch
    %13 = sbr.rel (0) target = $region9
  $region8: #{weighted_mse_loss.1} parent=0 // pred_region
    _
  $region9: #{weighted_mse_loss.1} parent=0 // pred_fallthru
    _
  %v14 = vld [vmem:[%s0] sm:$0xff]
  %v15 = vld [vmem:[%s0 + $0x8] sm:$0xff]
  %v16 = vld [vmem:[%s1] sm:$0xff]
  %v17 = vld [vmem:[%s1 + $0x8] sm:$0xff]
  %v18 = vsub.f32 %v14, %v16
  %v19 = vsub.f32 %v15, %v17
  %v20 = vmul.f32 %v18, %v18
  %v21 = vmul.f32 %v19, %v19
  %v22 = vmul.f32 %v16, %v20
  %v23 = vmul.f32 %v17, %v21
  %v24 = vadd.f32 %v16, %v17
  %v25 = vrot.slane %v24, 4
  %v26 = vadd.f32 %v24, %v25
  %v27 = vrot.slane %v26, 2
  %v28 = vadd.f32 %v26, %v27
  %v29 = vrot.slane %v28, 1
  %v30 = vadd.f32 %v28, %v29
  %31 = vst [vmem:[%s2] sm:$0x1] %v30
  %v32 = vadd.f32 %v20, %v21
  %v33 = vrot.slane %v32, 4
  %v34 = vadd.f32 %v32, %v33
  %v35 = vrot.slane %v34, 2
  %v36 = vadd.f32 %v34, %v35
  %v37 = vrot.slane %v36, 1
  %v38 = vadd.f32 %v36, %v37
  %39 = vst [vmem:[%s3] sm:$0x1] %v38
  %v40 = vadd.f32 %v22, %v23
  %v41 = vrot.slane %v40, 4
  %v42 = vadd.f32 %v40, %v41
  %v43 = vrot.slane %v42, 2
  %v44 = vadd.f32 %v42, %v43
  %v45 = vrot.slane %v44, 1
  %v46 = vadd.f32 %v44, %v45
  %47 = vst [vmem:[%s4] sm:$0x1] %v46
  // Predicated region
  $region10: #{weighted_mse_loss.1} parent=0 // pred_check
    _
  $region11: #{weighted_mse_loss.1} parent=0 // pred_check_branch
    %49 = sbr.rel (0) target = $region13
  $region12: #{weighted_mse_loss.1} parent=0 // pred_region
    _
  $region13: #{weighted_mse_loss.1} parent=0 // pred_fallthru
    _
  // Predicated region
  $region14: #{weighted_mse_loss.1} parent=0 // pred_check
    _
  $region15: #{weighted_mse_loss.1} parent=0 // pred_check_branch
    %51 = sbr.rel (0) target = $region17
  $region16: #{weighted_mse_loss.1} parent=0 // pred_region
    _
  $region17: #{weighted_mse_loss.1} parent=0 // pred_fallthru
    _
  // Predicated region
  $region18: #{weighted_mse_loss.1} parent=0 // pred_check
    _
  $region19: #{weighted_mse_loss.1} parent=0 // pred_check_branch
    %53 = sbr.rel (0) target = $region21
  $region20: #{weighted_mse_loss.1} parent=0 // pred_region
    _
  $region21: #{weighted_mse_loss.1} parent=0 // pred_fallthru
    _
  // Predicated region
  $region22: #{weighted_mse_loss.1} parent=0 // pred_check
    _
  $region23: #{weighted_mse_loss.1} parent=0 // pred_check_branch
    %55 = sbr.rel (0) target = $region25
  $region24: #{weighted_mse_loss.1} parent=0 // pred_region
    _
  $region25: #{weighted_mse_loss.1} parent=0 // pred_fallthru
    _
  // Predicated region
  $region26: #{weighted_mse_loss.1} parent=0 // pred_check
    _
  $region27: #{weighted_mse_loss.1} parent=0 // pred_check_branch
    %57 = sbr.rel (0) target = $region29
  $region28: #{weighted_mse_loss.1} parent=0 // pred_region
    _
  $region29: #{weighted_mse_loss.1} parent=0 // pred_fallthru
    _
  // Predicated region
  $region30: #{weighted_mse_loss.1} parent=0 // pred_check
    _
  $region31: #{weighted_mse_loss.1} parent=0 // pred_check_branch
    %59 = sbr.rel (0) target = $region33
  $region32: #{weighted_mse_loss.1} parent=0 // pred_region
    _
  $region33: #{weighted_mse_loss.1} parent=0 // pred_fallthru
    _

</llo_original>
